<compile_context>
chip_gen: v5e
topology: v5e:2x2
jax: 0.10.0
libtpu: 0.0.40
codegen_flags: <defaults>
</compile_context>

<pallas_src>
import functools

import jax
import jax.numpy as jnp
from jax import lax
from jax.experimental import pallas as pl
from jax.experimental.pallas import tpu as pltpu

_MASK_VALUE = -1e30  # finite "minus infinity": avoids inf-inf NaN edge cases


def _round_up(x: int, m: int) -> int:
    return ((x + m - 1) // m) * m


def _soft_select_kernel(support_ref, query_ref, out_ref,
                        m_sc, l_sc, acc_sc,
                        *, scale, ts, s_actual, needs_s_mask):
    si = pl.program_id(1)                       # position along the S reduction axis

    @pl.when(si == 0)
    def _init():
        m_sc[...] = jnp.full_like(m_sc, _MASK_VALUE)
        l_sc[...] = jnp.zeros_like(l_sc)
        acc_sc[...] = jnp.zeros_like(acc_sc)

    s = support_ref[...]                        # (TS, Dp)
    q = query_ref[...]                          # (TQ, Dp)
    # Fold 1/sqrt(D) into the query tile: TQ*Dp multiplies instead of TQ*TS.
    q = q * jnp.asarray(scale, dtype=q.dtype)

    # score[i, j] = <query_i, support_j>: contract last dims directly on the
    # MXU (no transposed copy of support).
    score = lax.dot_general(
        q, s,
        dimension_numbers=(((1,), (1,)), ((), ())),
        preferred_element_type=jnp.float32)     # (TQ, TS) f32

    if needs_s_mask:
        col = lax.broadcasted_iota(jnp.int32, score.shape, 1) + si * ts
        score = jnp.where(col < s_actual, score, _MASK_VALUE)

    # Online (flash-style) softmax over the S axis.
    m_prev = m_sc[...]                                          # (TQ, 1)
    m_new = jnp.maximum(m_prev, jnp.max(score, axis=1, keepdims=True))
    alpha = jnp.exp(m_prev - m_new)
    p = jnp.exp(score - m_new)                                  # (TQ, TS) f32

    l_sc[...] = alpha * l_sc[...] + jnp.sum(p, axis=1, keepdims=True)
    acc_sc[...] = alpha * acc_sc[...] + jnp.dot(
        p.astype(s.dtype), s, preferred_element_type=jnp.float32)
    m_sc[...] = m_new

    @pl.when(si == pl.num_programs(1) - 1)
    def _finalize():
        inv_l = pl.reciprocal(l_sc[...], approx=True)           # EUP vrcp
        out_ref[...] = (acc_sc[...] * inv_l).astype(out_ref.dtype)


@functools.partial(jax.jit, static_argnames=("tq", "ts"))
def soft_select_prototype(support: jax.Array, query: jax.Array,
                          *, tq: int = 256, ts: int = 512) -> jax.Array:
    """support: (S, D), query: (Q, D) -> center: (Q, D)."""
    Q, D = query.shape
    S, Ds = support.shape
    assert D == Ds, "support and query must share feature dim"

    scale = float(D) ** -0.5                    # uses the ORIGINAL D, not padded

    # Lane-dense feature dim: pad D to a multiple of 128 (zero columns do not
    # change the dot products; extra output columns are sliced off).
    d_pad = _round_up(D, 128)

    # Query tiles: sublane-aligned (16 covers both f32 and bf16 packing).
    q_align = _round_up(Q, 16)
    tq = min(tq, q_align)
    q_pad = _round_up(q_align, tq)

    # Support tiles: keep the score-matmul N dim lane-dense (multiple of 128).
    s_align = _round_up(S, 128)
    ts = min(ts, s_align)
    s_pad = _round_up(s_align, ts)

    def pad2(x, rows, cols):
        pr, pc = rows - x.shape[0], cols - x.shape[1]
        if pr == 0 and pc == 0:
            return x
        return jnp.pad(x, ((0, pr), (0, pc)))

    support_p = pad2(support, s_pad, d_pad)
    query_p = pad2(query, q_pad, d_pad)

    kernel = functools.partial(
        _soft_select_kernel,
        scale=scale, ts=ts, s_actual=S, needs_s_mask=(s_pad != S))

    grid = (q_pad // tq, s_pad // ts)           # (parallel Q, arbitrary S-reduction)

    out_p = pl.pallas_call(
        kernel,
        out_shape=jax.ShapeDtypeStruct((q_pad, d_pad), query.dtype),
        grid_spec=pltpu.PrefetchScalarGridSpec(
            num_scalar_prefetch=0,
            grid=grid,
            in_specs=[
                pl.BlockSpec((ts, d_pad), lambda qi, si: (si, 0)),  # support tile
                pl.BlockSpec((tq, d_pad), lambda qi, si: (qi, 0)),  # query tile
            ],
            out_specs=pl.BlockSpec((tq, d_pad), lambda qi, si: (qi, 0)),
            scratch_shapes=[
                pltpu.VMEM((tq, 1), jnp.float32),      # running max
                pltpu.VMEM((tq, 1), jnp.float32),      # running denominator
                pltpu.VMEM((tq, d_pad), jnp.float32),  # f32 output accumulator
            ],
        ),
        compiler_params=pltpu.CompilerParams(
            dimension_semantics=("parallel", "arbitrary")),
    )(support_p, query_p)

    return out_p[:Q, :D]


def _reference(support, query):
    # Pure-JAX reference mirroring the PyTorch forward exactly.
    scale = support.shape[1] ** -0.5
    score = (query @ support.T) * scale
    att = jax.nn.softmax(score, axis=1)
    return att @ support


def _check(S, Q, D, key, atol, rtol):
    k_s, k_q = jax.random.split(key)
    support = jax.random.normal(k_s, (S, D), dtype=jnp.float32)
    query = jax.random.normal(k_q, (Q, D), dtype=jnp.float32)

    center = jax.block_until_ready(soft_select_prototype(support, query))
    ref = _reference(support, query)

    assert center.shape == (Q, D)
    # Tolerance accounts for the approx (EUP) reciprocal in the softmax denom.
    assert jnp.allclose(center, ref, atol=atol, rtol=rtol), \
        f"mismatch vs reference for shapes S={S}, Q={Q}, D={D}"


if __name__ == "__main__":
    key = jax.random.PRNGKey(0)
    k1, k2 = jax.random.split(key)

    # Small shapes consistent with the forward pass (single tile + masking).
    _check(S=8, Q=8, D=32, key=k1, atol=1e-2, rtol=1e-2)
    # Unaligned multi-tile shapes (2 Q tiles, 2 S tiles, masked tail).
    _check(S=700, Q=300, D=96, key=k2, atol=1e-2, rtol=1e-2)

    print("KERNEL_OK")
</pallas_src>

<mosaic_0001>
module attributes {stable_mosaic.version = 11 : i64} {
  func.func @_soft_select_kernel(%arg0: i32, %arg1: i32, %arg2: memref<128x128xf32, #tpu.memory_space<vmem>>, %arg3: memref<16x128xf32, #tpu.memory_space<vmem>>, %arg4: memref<16x128xf32, #tpu.memory_space<vmem>>, %arg5: memref<16x1xf32, #tpu.memory_space<vmem>>, %arg6: memref<16x1xf32, #tpu.memory_space<vmem>>, %arg7: memref<16x128xf32, #tpu.memory_space<vmem>>) attributes {dimension_semantics = [#tpu.dimension_semantics<parallel>, #tpu.dimension_semantics<arbitrary>], iteration_bounds = array<i64: 1, 1>, scalar_prefetch = 0 : i64, scratch_operands = 3 : i64, tpu.core_type = #tpu.core_type<tc>, window_params = [{transform_indices = @transform_0, window_bounds = array<i64: 128, 128>}, {transform_indices = @transform_1, window_bounds = array<i64: 16, 128>}, {transform_indices = @transform_2, window_bounds = array<i64: 16, 128>}]} {
    %c0_i32 = arith.constant 0 : i32
    %0 = arith.cmpi eq, %arg1, %c0_i32 : i32
    %1 = arith.extui %0 : i1 to i32
    %c0_i32_0 = arith.constant 0 : i32
    %2 = arith.cmpi ne, %1, %c0_i32_0 : i32
    scf.if %2 {
      %cst_23 = arith.constant -1.000000e+30 : f32
      %41 = vector.broadcast %cst_23 : f32 to vector<16x1xf32>
      %c0_24 = arith.constant 0 : index
      %c0_25 = arith.constant 0 : index
      %42 = vector.load %arg5[%c0_24, %c0_25] : memref<16x1xf32, #tpu.memory_space<vmem>>, vector<16x1xf32>
      tpu.vector_store %arg5[%c0_24, %c0_25], %41 {strides = array<i32>} : memref<16x1xf32, #tpu.memory_space<vmem>>, vector<16x1xf32>,
      %cst_26 = arith.constant 0.000000e+00 : f32
      %43 = vector.broadcast %cst_26 : f32 to vector<16x1xf32>
      %c0_27 = arith.constant 0 : index
      %c0_28 = arith.constant 0 : index
      %44 = vector.load %arg6[%c0_27, %c0_28] : memref<16x1xf32, #tpu.memory_space<vmem>>, vector<16x1xf32>
      tpu.vector_store %arg6[%c0_27, %c0_28], %43 {strides = array<i32>} : memref<16x1xf32, #tpu.memory_space<vmem>>, vector<16x1xf32>,
      %cst_29 = arith.constant 0.000000e+00 : f32
      %45 = vector.broadcast %cst_29 : f32 to vector<16x128xf32>
      %c0_30 = arith.constant 0 : index
      %c0_31 = arith.constant 0 : index
      %46 = vector.load %arg7[%c0_30, %c0_31] : memref<16x128xf32, #tpu.memory_space<vmem>>, vector<16x128xf32>
      tpu.vector_store %arg7[%c0_30, %c0_31], %45 {strides = array<i32>} : memref<16x128xf32, #tpu.memory_space<vmem>>, vector<16x128xf32>,
    } else {
    }
    %c0 = arith.constant 0 : index
    %c0_1 = arith.constant 0 : index
    %3 = vector.load %arg2[%c0, %c0_1] : memref<128x128xf32, #tpu.memory_space<vmem>>, vector<128x128xf32>
    %c0_2 = arith.constant 0 : index
    %c0_3 = arith.constant 0 : index
    %4 = vector.load %arg3[%c0_2, %c0_3] : memref<16x128xf32, #tpu.memory_space<vmem>>, vector<16x128xf32>
    %cst = arith.constant 0.176776692 : f32
    %5 = vector.broadcast %cst : f32 to vector<16x128xf32>
    %6 = arith.mulf %4, %5 : vector<16x128xf32>
    %cst_4 = arith.constant dense<0.000000e+00> : vector<16x128xf32>
    %7 = tpu.matmul %6, %3, %cst_4 {dimension_numbers = #tpu.dot_dimension_numbers<[1], [1], [0], [0], [0, 0, 1, 0], [], []>} : vector<16x128xf32>, vector<128x128xf32>, vector<16x128xf32> -> vector<16x128xf32>
    %8 = tpu.iota {dimensions = array<i32: 1>} : vector<16x128xi32>
    %c128_i32 = arith.constant 128 : i32
    %9 = arith.muli %arg1, %c128_i32 : i32
    %10 = vector.broadcast %9 : i32 to vector<16x128xi32>
    %11 = arith.addi %8, %10 : vector<16x128xi32>
    %c8_i32 = arith.constant 8 : i32
    %12 = vector.broadcast %c8_i32 : i32 to vector<16x128xi32>
    %13 = arith.cmpi slt, %11, %12 : vector<16x128xi32>
    %cst_5 = arith.constant -1.000000e+30 : f32
    %14 = vector.broadcast %cst_5 : f32 to vector<16x128xf32>
    %15 = arith.select %13, %7, %14 : vector<16x128xi1>, vector<16x128xf32>
    %c0_6 = arith.constant 0 : index
    %c0_7 = arith.constant 0 : index
    %16 = vector.load %arg5[%c0_6, %c0_7] : memref<16x1xf32, #tpu.memory_space<vmem>>, vector<16x1xf32>
    %cst_8 = arith.constant dense<0xFF800000> : vector<16xf32>
    %17 = vector.multi_reduction <maximumf>, %15, %cst_8 [1] : vector<16x128xf32> to vector<16xf32>
    %18 = vector.shape_cast %17 : vector<16xf32> to vector<16x1xf32>
    %19 = arith.maximumf %16, %18 : vector<16x1xf32>
    %20 = arith.subf %16, %19 : vector<16x1xf32>
    %21 = math.exp %20 : vector<16x1xf32>
    %22 = vector.broadcast %19 : vector<16x1xf32> to vector<16x128xf32>
    %23 = arith.subf %15, %22 : vector<16x128xf32>
    %24 = math.exp %23 : vector<16x128xf32>
    %c0_9 = arith.constant 0 : index
    %c0_10 = arith.constant 0 : index
    %25 = vector.load %arg6[%c0_9, %c0_10] : memref<16x1xf32, #tpu.memory_space<vmem>>, vector<16x1xf32>
    %26 = arith.mulf %21, %25 : vector<16x1xf32>
    %cst_11 = arith.constant dense<0.000000e+00> : vector<16xf32>
    %27 = vector.multi_reduction <add>, %24, %cst_11 [1] : vector<16x128xf32> to vector<16xf32>
    %28 = vector.shape_cast %27 : vector<16xf32> to vector<16x1xf32>
    %29 = arith.addf %26, %28 : vector<16x1xf32>
    %c0_12 = arith.constant 0 : index
    %c0_13 = arith.constant 0 : index
    %30 = vector.load %arg6[%c0_12, %c0_13] : memref<16x1xf32, #tpu.memory_space<vmem>>, vector<16x1xf32>
    tpu.vector_store %arg6[%c0_12, %c0_13], %29 {strides = array<i32>} : memref<16x1xf32, #tpu.memory_space<vmem>>, vector<16x1xf32>,
    %c0_14 = arith.constant 0 : index
    %c0_15 = arith.constant 0 : index
    %31 = vector.load %arg7[%c0_14, %c0_15] : memref<16x128xf32, #tpu.memory_space<vmem>>, vector<16x128xf32>
    %32 = vector.broadcast %21 : vector<16x1xf32> to vector<16x128xf32>
    %33 = arith.mulf %32, %31 : vector<16x128xf32>
    %cst_16 = arith.constant dense<0.000000e+00> : vector<16x128xf32>
    %34 = tpu.matmul %24, %3, %cst_16 {dimension_numbers = #tpu.dot_dimension_numbers<[1], [0], [0], [1], [0, 0, 1, 1], [], []>} : vector<16x128xf32>, vector<128x128xf32>, vector<16x128xf32> -> vector<16x128xf32>
    %35 = arith.addf %33, %34 : vector<16x128xf32>
    %c0_17 = arith.constant 0 : index
    %c0_18 = arith.constant 0 : index
    %36 = vector.load %arg7[%c0_17, %c0_18] : memref<16x128xf32, #tpu.memory_space<vmem>>, vector<16x128xf32>
    tpu.vector_store %arg7[%c0_17, %c0_18], %35 {strides = array<i32>} : memref<16x128xf32, #tpu.memory_space<vmem>>, vector<16x128xf32>,
    %c0_19 = arith.constant 0 : index
    %c0_20 = arith.constant 0 : index
    %37 = vector.load %arg5[%c0_19, %c0_20] : memref<16x1xf32, #tpu.memory_space<vmem>>, vector<16x1xf32>
    tpu.vector_store %arg5[%c0_19, %c0_20], %19 {strides = array<i32>} : memref<16x1xf32, #tpu.memory_space<vmem>>, vector<16x1xf32>,
    %c0_i32_21 = arith.constant 0 : i32
    %38 = arith.cmpi eq, %arg1, %c0_i32_21 : i32
    %39 = arith.extui %38 : i1 to i32
    %c0_i32_22 = arith.constant 0 : i32
    %40 = arith.cmpi ne, %39, %c0_i32_22 : i32
    scf.if %40 {
      %c0_23 = arith.constant 0 : index
      %c0_24 = arith.constant 0 : index
      %41 = vector.load %arg6[%c0_23, %c0_24] : memref<16x1xf32, #tpu.memory_space<vmem>>, vector<16x1xf32>
      %42 = tpu.reciprocal %41 {approx = true} : vector<16x1xf32> -> vector<16x1xf32>
      %c0_25 = arith.constant 0 : index
      %c0_26 = arith.constant 0 : index
      %43 = vector.load %arg7[%c0_25, %c0_26] : memref<16x128xf32, #tpu.memory_space<vmem>>, vector<16x128xf32>
      %44 = vector.broadcast %42 : vector<16x1xf32> to vector<16x128xf32>
      %45 = arith.mulf %43, %44 : vector<16x128xf32>
      %c0_27 = arith.constant 0 : index
      %c0_28 = arith.constant 0 : index
      %46 = vector.load %arg4[%c0_27, %c0_28] : memref<16x128xf32, #tpu.memory_space<vmem>>, vector<16x128xf32>
      tpu.vector_store %arg4[%c0_27, %c0_28], %45 {strides = array<i32>} : memref<16x128xf32, #tpu.memory_space<vmem>>, vector<16x128xf32>,
    } else {
    }
    return
  }
  func.func @transform_0(%arg0: i32, %arg1: i32) -> (i32, i32) {
    %c0_i32 = arith.constant 0 : i32
    %c0_i32_0 = arith.constant 0 : i32
    return %arg1, %c0_i32 : i32, i32
  }
  func.func @transform_1(%arg0: i32, %arg1: i32) -> (i32, i32) {
    %c0_i32 = arith.constant 0 : i32
    %c0_i32_0 = arith.constant 0 : i32
    return %arg0, %c0_i32 : i32, i32
  }
  func.func @transform_2(%arg0: i32, %arg1: i32) -> (i32, i32) {
    %c0_i32 = arith.constant 0 : i32
    %c0_i32_0 = arith.constant 0 : i32
    return %arg0, %c0_i32 : i32, i32
  }
}

</mosaic_0001>

<llo_original>
// kernel: soft_select_prototype.1
$region0: #{soft_select_prototype.1}
  #allocation0 [shape = 'u32[]', space=smem, size = 0x4, offset = 0x4, fixed_abs, tag = 'smem constant byte address 0x4 - core index']
  #allocation1 [shape = 'u32[72,128]{1,0:T(1,128)}', space=vmem, size = 0x9000, scoped, tag = 'internal scratch']
  #allocation2 [shape = 'f32[16,1]{1,0:T(8,128)}', space=vmem, size = 0x2000, scoped, tag = 'scratch operand']
  #allocation3 [shape = 'f32[16,1]{1,0:T(8,128)}', space=vmem, size = 0x2000, scoped, tag = 'scratch operand']
  #allocation4 [shape = 'f32[16,128]{1,0:T(8,128)}', space=vmem, size = 0x2000, scoped, tag = 'scratch operand']
  %s0 = inlined_call_operand.vmem [shape: f32[128,128], index: 0, kind: input, shape index: {}]
  %s1 = inlined_call_operand.vmem [shape: f32[16,128], index: 1, kind: input, shape index: {}]
  %s2 = inlined_call_operand.vmem [shape: f32[16,128], index: 2, kind: output, shape index: {}]
  %s3 = sld [smem:[#allocation0]]
  $region26: #{soft_select_prototype.1} parent=0
    _
  %s5 = ssub.s32 1, %s3
  %s6 = scalar_select 0, %s5, %s3
  // Predicated region
  $region2: #{soft_select_prototype.1} parent=0 // pred_check
    _
  $region3: #{soft_select_prototype.1} parent=0 // pred_check_branch
    %8 = sbr.rel (0) target = $region5
  $region4: #{soft_select_prototype.1} parent=0 // pred_region
    _
  $region5: #{soft_select_prototype.1} parent=0 // pred_fallthru
    _
  // Predicated region
  $region6: #{soft_select_prototype.1} parent=0 // pred_check
    _
  $region7: #{soft_select_prototype.1} parent=0 // pred_check_branch
    %10 = sbr.rel (0) target = $region9
  $region8: #{soft_select_prototype.1} parent=0 // pred_region
    _
  $region9: #{soft_select_prototype.1} parent=0 // pred_fallthru
    _
  %p11 = scmp.eq.s32.totalorder 0, 0
  // Predicated region
  $region10: #{soft_select_prototype.1} parent=0 // pred_check
    %p12 = pneg %p11
  $region11: #{soft_select_prototype.1} parent=0 // pred_check_branch
    %14 = sbr.rel (%p12) target = $region13
  $region12: #{soft_select_prototype.1} parent=0 // pred_region
    %vm15 = vcmask 7168
    %16 = vst.msk [vmem:[#allocation2] sm:$0xff] %vm15, -1e+30
    %17 = vst.msk [vmem:[#allocation2 + $0x8] sm:$0xff] %vm15, -1e+30
    %18 = vst.msk [vmem:[#allocation3] sm:$0xff] %vm15, 0.0
    %19 = vst.msk [vmem:[#allocation3 + $0x8] sm:$0xff] %vm15, 0.0
    %20 = vst [vmem:[#allocation4] sm:$0xff] 0.0
    %21 = vst [vmem:[#allocation4 + $0x8] sm:$0xff] 0.0
  $region13: #{soft_select_prototype.1} parent=0 // pred_fallthru
    _
  %v22 = vld [vmem:[%s0] sm:$0xff]
  %v23 = vld [vmem:[%s0 + $0x8] sm:$0xff]
  %v24 = vld [vmem:[%s0 + $0x10] sm:$0xff]
  %v25 = vld [vmem:[%s0 + $0x18] sm:$0xff]
  %v26 = vld [vmem:[%s0 + $0x20] sm:$0xff]
  %v27 = vld [vmem:[%s0 + $0x28] sm:$0xff]
  %v28 = vld [vmem:[%s0 + $0x30] sm:$0xff]
  %v29 = vld [vmem:[%s0 + $0x38] sm:$0xff]
  %v30 = vld [vmem:[%s0 + $0x40] sm:$0xff]
  %v31 = vld [vmem:[%s0 + $0x48] sm:$0xff]
  %v32 = vld [vmem:[%s0 + $0x50] sm:$0xff]
  %v33 = vld [vmem:[%s0 + $0x58] sm:$0xff]
  %v34 = vld [vmem:[%s0 + $0x60] sm:$0xff]
  %v35 = vld [vmem:[%s0 + $0x68] sm:$0xff]
  %v36 = vld [vmem:[%s0 + $0x70] sm:$0xff]
  %v37 = vld [vmem:[%s0 + $0x78] sm:$0xff]
  %v38 = vld [vmem:[%s1] sm:$0xff]
  %v39 = vld [vmem:[%s1 + $0x8] sm:$0xff]
  %v40 = vmul.f32 %v38, 0.17677669
  %v41 = vmul.f32 %v39, 0.17677669
  %42 = vmatpush.xpose.msra.mxu0 %v37
  %43 = vmatpush.xpose.msra.mxu0 %v36
  %44 = vmatpush.xpose.msra.mxu0 %v35
  %45 = vmatpush.xpose.msra.mxu0 %v34
  %46 = vmatpush.xpose.msra.mxu0 %v33
  %47 = vmatpush.xpose.msra.mxu0 %v32
  %48 = vmatpush.xpose.msra.mxu0 %v31
  %49 = vmatpush.xpose.msra.mxu0 %v30
  %50 = vmatpush.xpose.msra.mxu0 %v29
  %51 = vmatpush.xpose.msra.mxu0 %v28
  %52 = vmatpush.xpose.msra.mxu0 %v27
  %53 = vmatpush.xpose.msra.mxu0 %v26
  %54 = vmatpush.xpose.msra.mxu0 %v25
  %55 = vmatpush.xpose.msra.mxu0 %v24
  %56 = vmatpush.xpose.msra.mxu0 %v23
  %57 = vmatpush.xpose.msra.mxu0 %v22
  %58 = vmatmul.f32.gmra.mxu0 %v40
  %v59 = vpop.f32.mrf.mxu0
  %v60 = vadd.f32 0.0, %v59
  %61 = vmatmul.f32.gmra.mxu0 %v41
  %v62 = vpop.f32.mrf.mxu0
  %v63 = vadd.f32 0.0, %v62
  %64 = vdwg.mxu0
  %v65 = vlaneseq
  %v66 = vand.u32 %v65, 127
  %s67 = smul.u32 0, 128
  %v68 = vstv %s67
  %v69 = vadd.s32 %v66, %v68
  %vm70 = vcmp.lt.s32.totalorder %v69, 8
  %v71 = vsel %vm70, %v60, -1e+30
  %v72 = vsel %vm70, %v63, -1e+30
  %v73 = vld [vmem:[#allocation2] sm:$0xff]
  %v74 = vld [vmem:[#allocation2 + $0x8] sm:$0xff]
  %75 = vmax.xlane.f32.xlu0 %v71
  %v76 = vpop.xlane.xlu0 %75
  %77 = vmax.xlane.f32.xlu0 %v72
  %v78 = vpop.xlane.xlu0 %77
  %v79 = vmax.f32 %v73, %v76
  %v80 = vmax.f32 %v74, %v78
  %v81 = vsub.f32 %v73, %v79
  %v82 = vsub.f32 %v74, %v80
  %v83 = vmul.f32 %v81, 1.442695
  %v84 = vpow.pop %v83
  %v85 = vmul.f32 %v82, 1.442695
  %v86 = vpow.pop %v85
  %88 = vset.pattern.permute.xlu0 0
  %89 = vperm.xlu0 %88, %v79
  %v90 = vpop.permute.xlu0 %89
  %93 = vset.pattern.permute.xlu0 0
  %94 = vperm.xlu0 %93, %v80
  %v95 = vpop.permute.xlu0 %94
  %v97 = vsub.f32 %v71, %v90
  %v98 = vsub.f32 %v72, %v95
  %v99 = vmul.f32 %v97, 1.442695
  %v100 = vpow.pop %v99
  %v101 = vmul.f32 %v98, 1.442695
  %v102 = vpow.pop %v101
  %v103 = vld [vmem:[#allocation3] sm:$0xff]
  %v104 = vld [vmem:[#allocation3 + $0x8] sm:$0xff]
  %v105 = vmul.f32 %v84, %v103
  %v106 = vmul.f32 %v86, %v104
  %107 = vadd.xlane.f32.xlu0 %v100
  %v108 = vpop.xlane.xlu0 %107
  %109 = vadd.xlane.f32.xlu0 %v102
  %v110 = vpop.xlane.xlu0 %109
  %v111 = vadd.f32 %v105, %v108
  %v112 = vadd.f32 %v106, %v110
  %vm113 = vcmask 7168
  %114 = vst.msk [vmem:[#allocation3] sm:$0xff] %vm113, %v111
  %115 = vst.msk [vmem:[#allocation3 + $0x8] sm:$0xff] %vm113, %v112
  %v116 = vld [vmem:[#allocation4] sm:$0xff]
  %v117 = vld [vmem:[#allocation4 + $0x8] sm:$0xff]
  %119 = vset.pattern.permute.xlu0 0
  %120 = vperm.xlu0 %119, %v84
  %v121 = vpop.permute.xlu0 %120
  %124 = vset.pattern.permute.xlu0 0
  %125 = vperm.xlu0 %124, %v86
  %v126 = vpop.permute.xlu0 %125
  %v128 = vmul.f32 %v121, %v116
  %v129 = vmul.f32 %v126, %v117
  %130 = vmatpush.msra.mxu0 %v37
  %131 = vmatpush.msra.mxu0 %v36
  %132 = vmatpush.msra.mxu0 %v35
  %133 = vmatpush.msra.mxu0 %v34
  %134 = vmatpush.msra.mxu0 %v33
  %135 = vmatpush.msra.mxu0 %v32
  %136 = vmatpush.msra.mxu0 %v31
  %137 = vmatpush.msra.mxu0 %v30
  %138 = vmatpush.msra.mxu0 %v29
  %139 = vmatpush.msra.mxu0 %v28
  %140 = vmatpush.msra.mxu0 %v27
  %141 = vmatpush.msra.mxu0 %v26
  %142 = vmatpush.msra.mxu0 %v25
  %143 = vmatpush.msra.mxu0 %v24
  %144 = vmatpush.msra.mxu0 %v23
  %145 = vmatpush.msra.mxu0 %v22
  %146 = vmatmul.f32.gmra.mxu0 %v100
  %v147 = vpop.f32.mrf.mxu0
  %v148 = vadd.f32 0.0, %v147
  %149 = vmatmul.f32.gmra.mxu0 %v102
  %v150 = vpop.f32.mrf.mxu0
  %v151 = vadd.f32 0.0, %v150
  %152 = vdwg.mxu0
  %v153 = vadd.f32 %v128, %v148
  %v154 = vadd.f32 %v129, %v151
  %155 = vst [vmem:[#allocation4] sm:$0xff] %v153
  %156 = vst [vmem:[#allocation4 + $0x8] sm:$0xff] %v154
  %157 = vst.msk [vmem:[#allocation2] sm:$0xff] %vm113, %v79
  %158 = vst.msk [vmem:[#allocation2 + $0x8] sm:$0xff] %vm113, %v80
  // Predicated region
  $region14: #{soft_select_prototype.1} parent=0 // pred_check
    %p159 = pneg %p11
  $region15: #{soft_select_prototype.1} parent=0 // pred_check_branch
    %161 = sbr.rel (%p159) target = $region17
  $region16: #{soft_select_prototype.1} parent=0 // pred_region
    %v162 = vld [vmem:[#allocation3] sm:$0xff]
    %v163 = vld [vmem:[#allocation3 + $0x8] sm:$0xff]
    %v164 = vrcp.pop %v162
    %v165 = vrcp.pop %v163
    %v166 = vld [vmem:[#allocation4] sm:$0xff]
    %v167 = vld [vmem:[#allocation4 + $0x8] sm:$0xff]
    %169 = vset.pattern.permute.xlu0 0
    %170 = vperm.xlu0 %169, %v164
    %v171 = vpop.permute.xlu0 %170
    %174 = vset.pattern.permute.xlu0 0
    %175 = vperm.xlu0 %174, %v165
    %v176 = vpop.permute.xlu0 %175
    %v178 = vmul.f32 %v166, %v171
    %v179 = vmul.f32 %v167, %v176
    %180 = vst [vmem:[%s2] sm:$0xff] %v178
    %181 = vst [vmem:[%s2 + $0x8] sm:$0xff] %v179
  $region17: #{soft_select_prototype.1} parent=0 // pred_fallthru
    _
  // Predicated region
  $region18: #{soft_select_prototype.1} parent=0 // pred_check
    _
  $region19: #{soft_select_prototype.1} parent=0 // pred_check_branch
    %183 = sbr.rel (0) target = $region21
  $region20: #{soft_select_prototype.1} parent=0 // pred_region
    _
  $region21: #{soft_select_prototype.1} parent=0 // pred_fallthru
    _
  // Predicated region
  $region22: #{soft_select_prototype.1} parent=0 // pred_check
    _
  $region23: #{soft_select_prototype.1} parent=0 // pred_check_branch
    %185 = sbr.rel (0) target = $region25
  $region24: #{soft_select_prototype.1} parent=0 // pred_region
    _
  $region25: #{soft_select_prototype.1} parent=0 // pred_fallthru
    _

</llo_original>
